<compile_context>
chip_gen: v7x
topology: tpu7x:2x2x1
jax: 0.10.0
libtpu: 0.0.40
codegen_flags: <defaults>
</compile_context>

<pallas_src>
import functools

import jax
import jax.numpy as jnp
from jax.experimental import pallas as pl
from jax.experimental.pallas import tpu as pltpu


_LANE_CHOICES = (1024, 512, 256, 128)     # lane-dense slab widths (multiples of 128)
_MIN_PALLAS_SIZE = 256 * 1024             # below this, fused XLA is strictly faster
_VMEM_LIMIT_BYTES = 48 * 1024 * 1024      # safe on v5e/v6e (128 MiB) and v7x (64 MiB)

_ROW_TILE_CACHE = None


def _modified_tanh_kernel(x_ref, o_ref, *, factor, translation):
    # Elementwise: EUP tanh + VPU mul-add, computed in the input dtype
    # (weak-typed Python constants keep bf16 inputs in bf16 end-to-end).
    o_ref[...] = jnp.tanh(x_ref[...]) * factor + translation


def _get_row_tile():
    """Rows per block: 1024 (4 MiB f32) default; 2048 on v7x-class chips."""
    global _ROW_TILE_CACHE
    if _ROW_TILE_CACHE is None:
        tile = 1024
        try:
            vmem_bytes = int(pltpu.get_tpu_info().vmem_capacity_bytes)
            # v7x-class: 64 MiB VMEM per core + ~3.2 TB/s HBM -> bigger blocks
            # cut the ~0.35 us/step overhead fraction from ~20% to ~5%.
            if vmem_bytes <= 80 * 1024 * 1024:
                tile = 2048
        except Exception:
            pass
        _ROW_TILE_CACHE = tile
    return _ROW_TILE_CACHE


def modified_tanh(x, factor=1.5, translation=0.5, *, min_pallas_size=_MIN_PALLAS_SIZE):
    """tanh(x) * factor + translation, elementwise (Pallas TPU kernel for large x)."""
    orig_shape = x.shape
    dtype = x.dtype
    total = x.size

    # Fast path: tiny inputs (the stated (2,4,16,16) use case) — kernel launch
    # overhead would dominate the actual work by 10-100x.
    if total == 0 or total < min_pallas_size:
        return (jnp.tanh(x) * factor + translation).astype(dtype)

    kernel = functools.partial(
        _modified_tanh_kernel, factor=factor, translation=translation
    )

    flat = x.reshape(-1)

    # Adaptive lane width: largest of {1024,512,256,128} dividing the
    # 128-aligned prefix, so rem == 0 whenever total % 128 == 0 (virtually all
    # real tensors) and every store is a full-width, unmasked vst.
    n_main = (total // 128) * 128
    rem = total - n_main
    lanes = next(l for l in _LANE_CHOICES if n_main % l == 0)

    main = flat if rem == 0 else flat[:n_main]
    main = main.reshape(-1, lanes)
    rows = main.shape[0]

    row_tile = _get_row_tile()
    if rows > row_tile:
        tr = row_tile                       # 8-aligned; ragged edge block is masked
    elif rows >= 16:
        # Exactly two 8-aligned row tiles so the "parallel" grid axis can use
        # both v7x TensorCores even for single-block-sized inputs.
        tr = max(8, (((rows + 1) // 2 + 7) // 8) * 8)
    else:
        tr = rows                           # full-dim block (always legal)

    grid = (pl.cdiv(rows, tr),)
    out_main = pl.pallas_call(
        kernel,
        out_shape=jax.ShapeDtypeStruct((rows, lanes), dtype),
        grid=grid,
        in_specs=[pl.BlockSpec((tr, lanes), lambda i: (i, 0))],
        out_specs=pl.BlockSpec((tr, lanes), lambda i: (i, 0)),
        compiler_params=pltpu.CompilerParams(
            dimension_semantics=("parallel",),
            vmem_limit_bytes=_VMEM_LIMIT_BYTES,
        ),
    )(main)

    if rem == 0:
        return out_main.reshape(orig_shape)

    # Rare: total % 128 != 0.  The <128-element tail is computed with plain jnp
    # (a second pallas_call + pad for <512 B of data is pure overhead).
    tail = (jnp.tanh(flat[n_main:]) * factor + translation).astype(dtype)
    out_flat = jnp.concatenate([out_main.reshape(-1), tail])
    return out_flat.reshape(orig_shape)


def modified_tanh_reference(x, factor=1.5, translation=0.5):
    return jnp.tanh(x) * factor + translation


if __name__ == "__main__":
    key = jax.random.PRNGKey(0)
    k1, k2, k3 = jax.random.split(key, 3)

    # 1) Primary use case: small NCHW activation tensor -> fused-XLA fast path.
    x1 = jax.random.normal(k1, (2, 4, 16, 16), dtype=jnp.float32)
    out1 = jax.block_until_ready(modified_tanh(x1))
    ref1 = modified_tanh_reference(x1)
    assert out1.shape == x1.shape and out1.dtype == x1.dtype
    assert jnp.allclose(out1, ref1, atol=1e-5, rtol=1e-5), "mismatch (fast path)"

    # 2) Same tensor forced through the Pallas kernel (validates TPU lowering).
    out1p = jax.block_until_ready(modified_tanh(x1, min_pallas_size=0))
    assert out1p.shape == x1.shape and out1p.dtype == x1.dtype
    assert jnp.allclose(out1p, ref1, atol=1e-5, rtol=1e-5), "mismatch (pallas path)"

    # 3) Odd-sized tensor: adaptive lanes + jnp tail (total % 128 != 0).
    x2 = jax.random.normal(k2, (3, 5, 7, 11), dtype=jnp.float32)
    out2 = jax.block_until_ready(modified_tanh(x2, min_pallas_size=0))
    ref2 = modified_tanh_reference(x2)
    assert out2.shape == x2.shape and out2.dtype == x2.dtype
    assert jnp.allclose(out2, ref2, atol=1e-5, rtol=1e-5), "mismatch (remainder path)"

    # 4) Mid-size tensor above the fast-path threshold: natural Pallas path with
    #    >= 2 grid steps (shards across both TensorCores on v7x).
    x3 = jax.random.normal(k3, (8, 64, 1024), dtype=jnp.float32)
    out3 = jax.block_until_ready(modified_tanh(x3))
    ref3 = modified_tanh_reference(x3)
    assert out3.shape == x3.shape and out3.dtype == x3.dtype
    assert jnp.allclose(out3, ref3, atol=1e-5, rtol=1e-5), "mismatch (multi-block path)"

    print("KERNEL_OK")
</pallas_src>

<mosaic_0001>
module attributes {stable_mosaic.version = 11 : i64} {
  func.func @_modified_tanh_kernel(%arg0: i32, %arg1: memref<2x1024xf32, #tpu.memory_space<vmem>>, %arg2: memref<2x1024xf32, #tpu.memory_space<vmem>>) attributes {dimension_semantics = [#tpu.dimension_semantics<parallel>], iteration_bounds = array<i64: 1>, scalar_prefetch = 0 : i64, scratch_operands = 0 : i64, tpu.core_type = #tpu.core_type<tc>, window_params = [{transform_indices = @transform_0, window_bounds = array<i64: 2, 1024>}, {transform_indices = @transform_1, window_bounds = array<i64: 2, 1024>}]} {
    %c0 = arith.constant 0 : index
    %c0_0 = arith.constant 0 : index
    %0 = vector.load %arg1[%c0, %c0_0] : memref<2x1024xf32, #tpu.memory_space<vmem>>, vector<2x1024xf32>
    %1 = math.tanh %0 : vector<2x1024xf32>
    %cst = arith.constant 1.500000e+00 : f32
    %2 = vector.broadcast %cst : f32 to vector<2x1024xf32>
    %3 = arith.mulf %1, %2 : vector<2x1024xf32>
    %cst_1 = arith.constant 5.000000e-01 : f32
    %4 = vector.broadcast %cst_1 : f32 to vector<2x1024xf32>
    %5 = arith.addf %3, %4 : vector<2x1024xf32>
    %c0_2 = arith.constant 0 : index
    %c0_3 = arith.constant 0 : index
    %6 = vector.load %arg2[%c0_2, %c0_3] : memref<2x1024xf32, #tpu.memory_space<vmem>>, vector<2x1024xf32>
    tpu.vector_store %arg2[%c0_2, %c0_3], %5 {strides = array<i32>} : memref<2x1024xf32, #tpu.memory_space<vmem>>, vector<2x1024xf32>,
    return
  }
  func.func @transform_0(%arg0: i32) -> (i32, i32) {
    %c0_i32 = arith.constant 0 : i32
    %c0_i32_0 = arith.constant 0 : i32
    return %arg0, %c0_i32 : i32, i32
  }
  func.func @transform_1(%arg0: i32) -> (i32, i32) {
    %c0_i32 = arith.constant 0 : i32
    %c0_i32_0 = arith.constant 0 : i32
    return %arg0, %c0_i32 : i32, i32
  }
}

</mosaic_0001>

<llo_original>
// kernel: tpu_custom_call.1
$region0: #{tpu_custom_call.1}
  #allocation0 [shape = 'u32[]', space=smem, size = 0x4, offset = 0x4, fixed_abs, tag = 'smem constant byte address 0x4 - core index']
  #allocation1 [shape = 'u32[144,128]{1,0:T(1,128)}', space=vmem, size = 0x12000, scoped, tag = 'internal scratch']
  %s0 = inlined_call_operand.hbm [shape: f32[2,1024], index: 0, kind: input, shape index: {}]
  %s1 = inlined_call_operand.hbm [shape: f32[2,1024], index: 1, kind: output, shape index: {}]
  %s2 = sld [smem:[#allocation0]]
  $region18: #{tpu_custom_call.1} parent=0
    _
  %s4 = ssub.s32 1, %s2
  %s5 = scalar_select 0, %s4, %s2
  $region1: #{tpu_custom_call.1} parent=0
    #allocation2 [shape = 'u8[8192]{0}', space=vmem, size = 0x2000, scoped, tag = 'input window, operand 0, single buffered']
    #allocation3 [shape = 's32[1]{0}', space=sflag, size = 0x4, scoped, tag = 'scoped memory for tpu_custom_call.1']
    #allocation4 [shape = 's32[1]{0}', space=sflag, size = 0x4, scoped, tag = 'scoped memory for tpu_custom_call.1']
    #allocation5 [shape = 'u8[8192]{0}', space=vmem, size = 0x2000, scoped, tag = 'output window, operand 0, single buffered']
    %6 = vsyncpa [#allocation3], 0
    %7 = vsyncpa [#allocation4], 0
    // Predicated region
    $region2: #{tpu_custom_call.1} parent=1 // pred_check
      _
    $region3: #{tpu_custom_call.1} parent=1 // pred_check_branch
      %9 = sbr.rel (0) target = $region5
    $region4: #{tpu_custom_call.1} parent=1 // pred_region
      %s11 = ssub.s32 256, 256
      %12 = vsyncadd [#allocation3], %s11
      %s14 = sshll.u32 [#allocation2], 4
      %s15 = int_to_ptr.vmem [resolvable:$true] %s14
      %17 = dma.hbm_to_vmem [thread:$0]  %s0, 256, %s15, [#allocation3]
    $region5: #{tpu_custom_call.1} parent=1 // pred_fallthru
      _
    // Predicated region
    $region6: #{tpu_custom_call.1} parent=1 // pred_check
      _
    $region7: #{tpu_custom_call.1} parent=1 // pred_check_branch
      %19 = sbr.rel (0) target = $region9
    $region8: #{tpu_custom_call.1} parent=1 // pred_region
      %20 = dma.done [#allocation3], 256
    $region9: #{tpu_custom_call.1} parent=1 // pred_fallthru
      _
    %v21 = vld [vmem:[#allocation2] sm:$0xff]
    %v22 = vld [vmem:[#allocation2 + $0x8] sm:$0xff]
    %v23 = vtanh.pop %v21
    %v24 = vtanh.pop %v22
    %v25 = vmul.f32 %v23, 1.5
    %v26 = vmul.f32 %v24, 1.5
    %v27 = vadd.f32 %v25, 0.5
    %v28 = vadd.f32 %v26, 0.5
    %29 = vst [vmem:[#allocation5] sm:$0xff] %v27
    %30 = vst [vmem:[#allocation5 + $0x8] sm:$0xff] %v28
    // Predicated region
    $region10: #{tpu_custom_call.1} parent=1 // pred_check
      _
    $region11: #{tpu_custom_call.1} parent=1 // pred_check_branch
      %32 = sbr.rel (0) target = $region13
    $region12: #{tpu_custom_call.1} parent=1 // pred_region
      %s34 = ssub.s32 256, 256
      %35 = vsyncadd [#allocation4], %s34
      %s37 = sshll.u32 [#allocation5], 4
      %s38 = int_to_ptr.vmem [resolvable:$true] %s37
      %40 = dma.vmem_to_hbm [thread:$0]  %s38, 256, %s1, [#allocation4]
    $region13: #{tpu_custom_call.1} parent=1 // pred_fallthru
      _
    // Predicated region
    $region14: #{tpu_custom_call.1} parent=1 // pred_check
      _
    $region15: #{tpu_custom_call.1} parent=1 // pred_check_branch
      %42 = sbr.rel (0) target = $region17
    $region16: #{tpu_custom_call.1} parent=1 // pred_region
      %43 = dma.done [#allocation4], 256
    $region17: #{tpu_custom_call.1} parent=1 // pred_fallthru
      _
    %44 = vsyncpa [#allocation3], 1
    %45 = vsyncpa [#allocation4], 1

</llo_original>
